<compile_context>
chip_gen: v7x
topology: tpu7x:2x2x1
jax: 0.10.0
libtpu: 0.0.40
codegen_flags: <defaults>
</compile_context>

<pallas_src>
import functools

import jax
import jax.numpy as jnp
from jax.experimental import pallas as pl
from jax.experimental.pallas import tpu as pltpu

_BLOCK_ELEMS = 1 << 18          # ~1 MiB of f32 per block (in+out double-buffered ~4 MiB)
_LANE_CANDIDATES = (1024, 512, 256, 128)


def _vector_scale_noise_kernel(seed_ref, x_ref, o_ref, *, alpha: float,
                               row_tile: int, lanes: int):
    i = pl.program_id(0)

    xf = x_ref[...].astype(jnp.float32)

    # Global linear index of every element in the 2-D slab (the per-element counter).
    # (int32 counter; aliases only past 2^32 elements, fine for this op.)
    row = jax.lax.broadcasted_iota(jnp.int32, (row_tile, lanes), 0)
    col = jax.lax.broadcasted_iota(jnp.int32, (row_tile, lanes), 1)
    lin = ((i * row_tile + row) * lanes + col).astype(jnp.uint32)

    # Mix in the (pre-scrambled) seed, then 2-round "lowbias32" hash -> 32 random bits.
    z = lin + seed_ref[0].astype(jnp.uint32)
    z = z ^ (z >> jnp.uint32(16))
    z = z * jnp.uint32(0x7FEB352D)
    z = z ^ (z >> jnp.uint32(15))
    z = z * jnp.uint32(0x846CA68B)
    z = z ^ (z >> jnp.uint32(16))

    # Exponent trick: 23 random mantissa bits, exponent of 1.0 -> f in [1, 2).
    f = jax.lax.bitcast_convert_type(
        (z >> jnp.uint32(9)) | jnp.uint32(0x3F800000), jnp.float32)

    # u = 2*f - 3 in [-1, 1); fold alpha:  t = f*(2a) - 3a  in [-alpha, alpha).
    t = f * jnp.float32(2.0 * alpha) - jnp.float32(3.0 * alpha)

    o_ref[...] = (xf + jnp.abs(xf) * t).astype(o_ref.dtype)


def vector_scale_noise(x: jnp.ndarray,
                       seed: int = 0,
                       alpha: float = 0.01,
                       training: bool = True) -> jnp.ndarray:
    """JAX/Pallas equivalent of VectorScaleNoise.forward."""
    if not training:
        return x

    orig_shape = x.shape
    orig_dtype = x.dtype

    flat = x.reshape(-1)
    total = flat.shape[0]

    # Widest lane dim that divides the element count (avoids the padding pass).
    lanes = None
    for cand in _LANE_CANDIDATES:
        if total % cand == 0:
            lanes = cand
            break
    if lanes is None:
        lanes = 128
        padded = pl.cdiv(total, lanes) * lanes
        flat = jnp.pad(flat, (0, padded - total))
    rows = flat.shape[0] // lanes
    x2d = flat.reshape(rows, lanes)

    # Big lane-dense row tiles; clamp for tiny inputs (multiple of 8 sublanes).
    row_tile = max(8, min(_BLOCK_ELEMS // lanes, ((rows + 7) // 8) * 8))
    grid = (pl.cdiv(rows, row_tile),)

    # Scramble the seed with a large odd constant so nearby seeds give
    # unrelated streams (tiles are decorrelated by the per-element counter).
    seed_arr = (jnp.asarray([seed], dtype=jnp.uint32)
                * jnp.uint32(0x9E3779B1)).astype(jnp.int32)

    kernel = functools.partial(_vector_scale_noise_kernel,
                               alpha=float(alpha),
                               row_tile=row_tile, lanes=lanes)

    out2d = pl.pallas_call(
        kernel,
        out_shape=jax.ShapeDtypeStruct((rows, lanes), orig_dtype),
        grid_spec=pltpu.PrefetchScalarGridSpec(
            num_scalar_prefetch=1,
            grid=grid,
            in_specs=[pl.BlockSpec((row_tile, lanes), lambda i, seed: (i, 0))],
            out_specs=pl.BlockSpec((row_tile, lanes), lambda i, seed: (i, 0)),
        ),
        compiler_params=pltpu.CompilerParams(
            # Stateless counter-based PRNG -> safe to shard across cores (v7x).
            dimension_semantics=("parallel",),
        ),
    )(seed_arr, x2d)

    out = out2d.reshape(-1)
    if out.shape[0] != total:
        out = out[:total]
    return out.reshape(orig_shape)


if __name__ == "__main__":
    key = jax.random.PRNGKey(0)
    B, C, H, W = 2, 4, 16, 16
    x = jax.random.normal(key, (B, C, H, W), dtype=jnp.float32)

    alpha = 0.01
    out = vector_scale_noise(x, seed=1234, alpha=alpha, training=True)
    out = jax.block_until_ready(out)

    # Sanity checks: shape/dtype preserved, noise bounded by alpha*|x|, noise applied.
    assert out.shape == x.shape
    assert out.dtype == x.dtype
    diff = jnp.abs(out - x)
    bound = alpha * jnp.abs(x) + 1e-6
    assert bool(jnp.all(diff <= bound)), "noise exceeds alpha*|x| bound"
    assert bool(jnp.all(jnp.isfinite(out)))
    assert bool(jnp.any(diff > 0)), "no noise was applied"

    # Eval mode is identity.
    out_eval = jax.block_until_ready(vector_scale_noise(x, training=False))
    assert bool(jnp.all(out_eval == x))

    print("KERNEL_OK")
</pallas_src>

<mosaic_0001>
module attributes {stable_mosaic.version = 11 : i64} {
  func.func @_vector_scale_noise_kernel(%arg0: i32, %arg1: memref<1xi32, #tpu.memory_space<smem>>, %arg2: memref<8x1024xf32, #tpu.memory_space<vmem>>, %arg3: memref<8x1024xf32, #tpu.memory_space<vmem>>) attributes {dimension_semantics = [#tpu.dimension_semantics<parallel>], iteration_bounds = array<i64: 1>, scalar_prefetch = 1 : i64, scratch_operands = 0 : i64, tpu.core_type = #tpu.core_type<tc>, window_params = [{transform_indices = @transform_0, window_bounds = array<i64: 8, 1024>}, {transform_indices = @transform_1, window_bounds = array<i64: 8, 1024>}]} {
    %c0 = arith.constant 0 : index
    %c0_0 = arith.constant 0 : index
    %0 = vector.load %arg2[%c0, %c0_0] : memref<8x1024xf32, #tpu.memory_space<vmem>>, vector<8x1024xf32>
    %1 = tpu.iota {dimensions = array<i32: 0>} : vector<8x1024xi32>
    %2 = tpu.iota {dimensions = array<i32: 1>} : vector<8x1024xi32>
    %c8_i32 = arith.constant 8 : i32
    %3 = arith.muli %arg0, %c8_i32 : i32
    %4 = vector.broadcast %3 : i32 to vector<8x1024xi32>
    %5 = arith.addi %4, %1 : vector<8x1024xi32>
    %c1024_i32 = arith.constant 1024 : i32
    %6 = vector.broadcast %c1024_i32 : i32 to vector<8x1024xi32>
    %7 = arith.muli %5, %6 : vector<8x1024xi32>
    %8 = arith.addi %7, %2 : vector<8x1024xi32>
    %c0_1 = arith.constant 0 : index
    %9 = memref.load %arg1[%c0_1] : memref<1xi32, #tpu.memory_space<smem>>
    %10 = vector.broadcast %9 : i32 to vector<8x1024xi32>
    %11 = arith.addi %8, %10 : vector<8x1024xi32>
    %c16_i32 = arith.constant 16 : i32
    %12 = vector.broadcast %c16_i32 : i32 to vector<8x1024xi32>
    %13 = arith.shrui %11, %12 : vector<8x1024xi32>
    %14 = arith.xori %11, %13 : vector<8x1024xi32>
    %c2146121005_i32 = arith.constant 2146121005 : i32
    %15 = vector.broadcast %c2146121005_i32 : i32 to vector<8x1024xi32>
    %16 = arith.muli %14, %15 : vector<8x1024xi32>
    %c15_i32 = arith.constant 15 : i32
    %17 = vector.broadcast %c15_i32 : i32 to vector<8x1024xi32>
    %18 = arith.shrui %16, %17 : vector<8x1024xi32>
    %19 = arith.xori %16, %18 : vector<8x1024xi32>
    %c-2073254261_i32 = arith.constant -2073254261 : i32
    %20 = vector.broadcast %c-2073254261_i32 : i32 to vector<8x1024xi32>
    %21 = arith.muli %19, %20 : vector<8x1024xi32>
    %c16_i32_2 = arith.constant 16 : i32
    %22 = vector.broadcast %c16_i32_2 : i32 to vector<8x1024xi32>
    %23 = arith.shrui %21, %22 : vector<8x1024xi32>
    %24 = arith.xori %21, %23 : vector<8x1024xi32>
    %c9_i32 = arith.constant 9 : i32
    %25 = vector.broadcast %c9_i32 : i32 to vector<8x1024xi32>
    %26 = arith.shrui %24, %25 : vector<8x1024xi32>
    %c1065353216_i32 = arith.constant 1065353216 : i32
    %27 = vector.broadcast %c1065353216_i32 : i32 to vector<8x1024xi32>
    %28 = arith.ori %26, %27 : vector<8x1024xi32>
    %29 = tpu.bitcast %28 : vector<8x1024xi32> -> vector<8x1024xf32>
    %cst = arith.constant 2.000000e-02 : f32
    %30 = vector.broadcast %cst : f32 to vector<8x1024xf32>
    %31 = arith.mulf %29, %30 : vector<8x1024xf32>
    %cst_3 = arith.constant 3.000000e-02 : f32
    %32 = vector.broadcast %cst_3 : f32 to vector<8x1024xf32>
    %33 = arith.subf %31, %32 : vector<8x1024xf32>
    %34 = math.absf %0 : vector<8x1024xf32>
    %35 = arith.mulf %34, %33 : vector<8x1024xf32>
    %36 = arith.addf %0, %35 : vector<8x1024xf32>
    %c0_4 = arith.constant 0 : index
    %c0_5 = arith.constant 0 : index
    %37 = vector.load %arg3[%c0_4, %c0_5] : memref<8x1024xf32, #tpu.memory_space<vmem>>, vector<8x1024xf32>
    tpu.vector_store %arg3[%c0_4, %c0_5], %36 {strides = array<i32>} : memref<8x1024xf32, #tpu.memory_space<vmem>>, vector<8x1024xf32>,
    return
  }
  func.func @transform_0(%arg0: i32, %arg1: memref<1xi32, #tpu.memory_space<smem>>) -> (i32, i32) {
    %c0_i32 = arith.constant 0 : i32
    %c0_i32_0 = arith.constant 0 : i32
    return %arg0, %c0_i32 : i32, i32
  }
  func.func @transform_1(%arg0: i32, %arg1: memref<1xi32, #tpu.memory_space<smem>>) -> (i32, i32) {
    %c0_i32 = arith.constant 0 : i32
    %c0_i32_0 = arith.constant 0 : i32
    return %arg0, %c0_i32 : i32, i32
  }
}

</mosaic_0001>

<llo_original>
// kernel: tpu_custom_call.1
$region0: #{tpu_custom_call.1}
  #allocation0 [shape = 'u32[]', space=smem, size = 0x4, offset = 0x4, fixed_abs, tag = 'smem constant byte address 0x4 - core index']
  #allocation1 [shape = 'u32[144,128]{1,0:T(1,128)}', space=vmem, size = 0x12000, scoped, tag = 'internal scratch']
  #allocation2 [shape = 's32[1]{0}', space=sflag, size = 0x4, scoped, tag = 'scoped memory for tpu_custom_call.1']
  #allocation3 [shape = 's32[1]{0:T(128)S(6)}', space=smem, size = 0x200, scoped, tag = 'prefetched SMEM operand 0']
  %s0 = inlined_call_operand.<no memory space> [shape: s32[1], index: 0, kind: input, shape index: {}]
  %s1 = inlined_call_operand.hbm [shape: f32[2,1024], index: 1, kind: input, shape index: {}]
  %s2 = inlined_call_operand.hbm [shape: f32[2,1024], index: 2, kind: output, shape index: {}]
  %s3 = sld [smem:[#allocation0]]
  $region18: #{tpu_custom_call.1} parent=0
    _
  %s5 = ssub.s32 1, %s3
  %s6 = scalar_select 0, %s5, %s3
  %7 = sst [smem:[#allocation3]] %s0
  $region1: #{tpu_custom_call.1} parent=0
    #allocation4 [shape = 'u8[32768]{0}', space=vmem, size = 0x8000, scoped, tag = 'input window, operand 1, single buffered']
    #allocation5 [shape = 's32[1]{0}', space=sflag, size = 0x4, scoped, tag = 'scoped memory for tpu_custom_call.1']
    #allocation6 [shape = 's32[1]{0}', space=sflag, size = 0x4, scoped, tag = 'scoped memory for tpu_custom_call.1']
    #allocation7 [shape = 'u8[32768]{0}', space=vmem, size = 0x8000, scoped, tag = 'output window, operand 0, single buffered']
    %8 = vsyncpa [#allocation5], 0
    %9 = vsyncpa [#allocation6], 0
    // Predicated region
    $region2: #{tpu_custom_call.1} parent=1 // pred_check
      _
    $region3: #{tpu_custom_call.1} parent=1 // pred_check_branch
      %11 = sbr.rel (0) target = $region5
    $region4: #{tpu_custom_call.1} parent=1 // pred_region
      %s13 = ssub.s32 1024, 256
      %14 = vsyncadd [#allocation5], %s13
      %s15 = sshll.u32 [#allocation4], 4
      %s16 = int_to_ptr.vmem [resolvable:$true] %s15
      %21 = dma.hbm_to_vmem [thread:$0]  %s1, 256, %s16, [#allocation5], 256, 256, 16
    $region5: #{tpu_custom_call.1} parent=1 // pred_fallthru
      _
    // Predicated region
    $region6: #{tpu_custom_call.1} parent=1 // pred_check
      _
    $region7: #{tpu_custom_call.1} parent=1 // pred_check_branch
      %23 = sbr.rel (0) target = $region9
    $region8: #{tpu_custom_call.1} parent=1 // pred_region
      %24 = dma.done [#allocation5], 1024
    $region9: #{tpu_custom_call.1} parent=1 // pred_fallthru
      _
    %v25 = vld [vmem:[#allocation4] sm:$0xff]
    %v26 = vld [vmem:[#allocation4 + $0x8] sm:$0xff]
    %v27 = vld [vmem:[#allocation4 + $0x10] sm:$0xff]
    %v28 = vld [vmem:[#allocation4 + $0x18] sm:$0xff]
    %v29 = vld [vmem:[#allocation4 + $0x20] sm:$0xff]
    %v30 = vld [vmem:[#allocation4 + $0x28] sm:$0xff]
    %v31 = vld [vmem:[#allocation4 + $0x30] sm:$0xff]
    %v32 = vld [vmem:[#allocation4 + $0x38] sm:$0xff]
    %v33 = vlaneseq
    %v34 = vshrl.u32 %v33, 7
    %v35 = vlaneseq
    %v36 = vand.u32 %v35, 127
    %v37 = vadd.s32 %v36, 128
    %v38 = vadd.s32 %v36, 256
    %v39 = vadd.s32 %v36, 384
    %v40 = vadd.s32 %v36, 512
    %v41 = vadd.s32 %v36, 640
    %v42 = vadd.s32 %v36, 768
    %v43 = vadd.s32 %v36, 896
    %s44 = smul.u32 0, 8
    %v45 = vstv %s44
    %v46 = vadd.s32 %v45, %v34
    %v47 = vmul.u32 %v46, 1024
    %v48 = vadd.s32 %v47, %v36
    %v49 = vadd.s32 %v47, %v37
    %v50 = vadd.s32 %v47, %v38
    %v51 = vadd.s32 %v47, %v39
    %v52 = vadd.s32 %v47, %v40
    %v53 = vadd.s32 %v47, %v41
    %v54 = vadd.s32 %v47, %v42
    %v55 = vadd.s32 %v47, %v43
    %s56 = sld [smem:[#allocation3]]
    %v57 = vstv %s56
    %v58 = vadd.s32 %v48, %v57
    %v59 = vadd.s32 %v49, %v57
    %v60 = vadd.s32 %v50, %v57
    %v61 = vadd.s32 %v51, %v57
    %v62 = vadd.s32 %v52, %v57
    %v63 = vadd.s32 %v53, %v57
    %v64 = vadd.s32 %v54, %v57
    %v65 = vadd.s32 %v55, %v57
    %v66 = vshrl.u32 %v58, 16
    %v67 = vshrl.u32 %v59, 16
    %v68 = vshrl.u32 %v60, 16
    %v69 = vshrl.u32 %v61, 16
    %v70 = vshrl.u32 %v62, 16
    %v71 = vshrl.u32 %v63, 16
    %v72 = vshrl.u32 %v64, 16
    %v73 = vshrl.u32 %v65, 16
    %v74 = vxor.u32 %v58, %v66
    %v75 = vxor.u32 %v59, %v67
    %v76 = vxor.u32 %v60, %v68
    %v77 = vxor.u32 %v61, %v69
    %v78 = vxor.u32 %v62, %v70
    %v79 = vxor.u32 %v63, %v71
    %v80 = vxor.u32 %v64, %v72
    %v81 = vxor.u32 %v65, %v73
    %v82 = vmul.u32 %v74, 2146121005
    %v83 = vmul.u32 %v75, 2146121005
    %v84 = vmul.u32 %v76, 2146121005
    %v85 = vmul.u32 %v77, 2146121005
    %v86 = vmul.u32 %v78, 2146121005
    %v87 = vmul.u32 %v79, 2146121005
    %v88 = vmul.u32 %v80, 2146121005
    %v89 = vmul.u32 %v81, 2146121005
    %v90 = vshrl.u32 %v82, 15
    %v91 = vshrl.u32 %v83, 15
    %v92 = vshrl.u32 %v84, 15
    %v93 = vshrl.u32 %v85, 15
    %v94 = vshrl.u32 %v86, 15
    %v95 = vshrl.u32 %v87, 15
    %v96 = vshrl.u32 %v88, 15
    %v97 = vshrl.u32 %v89, 15
    %v98 = vxor.u32 %v82, %v90
    %v99 = vxor.u32 %v83, %v91
    %v100 = vxor.u32 %v84, %v92
    %v101 = vxor.u32 %v85, %v93
    %v102 = vxor.u32 %v86, %v94
    %v103 = vxor.u32 %v87, %v95
    %v104 = vxor.u32 %v88, %v96
    %v105 = vxor.u32 %v89, %v97
    %v106 = vmul.u32 %v98, 2221713035
    %v107 = vmul.u32 %v99, 2221713035
    %v108 = vmul.u32 %v100, 2221713035
    %v109 = vmul.u32 %v101, 2221713035
    %v110 = vmul.u32 %v102, 2221713035
    %v111 = vmul.u32 %v103, 2221713035
    %v112 = vmul.u32 %v104, 2221713035
    %v113 = vmul.u32 %v105, 2221713035
    %v114 = vshrl.u32 %v106, 16
    %v115 = vshrl.u32 %v107, 16
    %v116 = vshrl.u32 %v108, 16
    %v117 = vshrl.u32 %v109, 16
    %v118 = vshrl.u32 %v110, 16
    %v119 = vshrl.u32 %v111, 16
    %v120 = vshrl.u32 %v112, 16
    %v121 = vshrl.u32 %v113, 16
    %v122 = vxor.u32 %v106, %v114
    %v123 = vxor.u32 %v107, %v115
    %v124 = vxor.u32 %v108, %v116
    %v125 = vxor.u32 %v109, %v117
    %v126 = vxor.u32 %v110, %v118
    %v127 = vxor.u32 %v111, %v119
    %v128 = vxor.u32 %v112, %v120
    %v129 = vxor.u32 %v113, %v121
    %v130 = vshrl.u32 %v122, 9
    %v131 = vshrl.u32 %v123, 9
    %v132 = vshrl.u32 %v124, 9
    %v133 = vshrl.u32 %v125, 9
    %v134 = vshrl.u32 %v126, 9
    %v135 = vshrl.u32 %v127, 9
    %v136 = vshrl.u32 %v128, 9
    %v137 = vshrl.u32 %v129, 9
    %v138 = vor.u32 %v130, 1065353216
    %v139 = vor.u32 %v131, 1065353216
    %v140 = vor.u32 %v132, 1065353216
    %v141 = vor.u32 %v133, 1065353216
    %v142 = vor.u32 %v134, 1065353216
    %v143 = vor.u32 %v135, 1065353216
    %v144 = vor.u32 %v136, 1065353216
    %v145 = vor.u32 %v137, 1065353216
    %v154 = vmul.f32 %v138, 0.02
    %v155 = vmul.f32 %v139, 0.02
    %v156 = vmul.f32 %v140, 0.02
    %v157 = vmul.f32 %v141, 0.02
    %v158 = vmul.f32 %v142, 0.02
    %v159 = vmul.f32 %v143, 0.02
    %v160 = vmul.f32 %v144, 0.02
    %v161 = vmul.f32 %v145, 0.02
    %v162 = vsub.f32 %v154, 0.03
    %v163 = vsub.f32 %v155, 0.03
    %v164 = vsub.f32 %v156, 0.03
    %v165 = vsub.f32 %v157, 0.03
    %v166 = vsub.f32 %v158, 0.03
    %v167 = vsub.f32 %v159, 0.03
    %v168 = vsub.f32 %v160, 0.03
    %v169 = vsub.f32 %v161, 0.03
    %v170 = vand.u32 2147483647, %v25
    %v171 = vand.u32 2147483647, %v26
    %v172 = vand.u32 2147483647, %v27
    %v173 = vand.u32 2147483647, %v28
    %v174 = vand.u32 2147483647, %v29
    %v175 = vand.u32 2147483647, %v30
    %v176 = vand.u32 2147483647, %v31
    %v177 = vand.u32 2147483647, %v32
    %v186 = vcombine.low %v162, %v163
    %v187 = vcombine.high %v162, %v163
    %v188 = vcombine.low %v164, %v165
    %v189 = vcombine.high %v164, %v165
    %v191 = vunpack.c.l.s4 1983009808
    %v192 = vunpack.c.0.s8 %v191
    %v193 = vlaneseq
    %v194 = vshrl.u32 %v193, 7
    %v195 = vsub.s32 %v192, %v194
    %v196 = vrot.slane %v186, %v195
    %v198 = vunpack.c.l.s4 1983009808
    %v199 = vunpack.c.0.s8 %v198
    %v200 = vlaneseq
    %v201 = vshrl.u32 %v200, 7
    %v202 = vsub.s32 %v199, %v201
    %v203 = vrot.slane %v187, %v202
    %v205 = vunpack.c.l.s4 1983009808
    %v206 = vunpack.c.0.s8 %v205
    %v207 = vlaneseq
    %v208 = vshrl.u32 %v207, 7
    %v209 = vsub.s32 %v206, %v208
    %v210 = vrot.slane %v188, %v209
    %v212 = vunpack.c.l.s4 1983009808
    %v213 = vunpack.c.0.s8 %v212
    %v214 = vlaneseq
    %v215 = vshrl.u32 %v214, 7
    %v216 = vsub.s32 %v213, %v215
    %v217 = vrot.slane %v189, %v216
    %v218 = vcombine.low %v196, %v210
    %v219 = vcombine.high %v196, %v210
    %v220 = vcombine.low %v203, %v217
    %v221 = vcombine.high %v203, %v217
    %v222 = vcombine.low %v166, %v167
    %v223 = vcombine.high %v166, %v167
    %v224 = vcombine.low %v168, %v169
    %v225 = vcombine.high %v168, %v169
    %v227 = vunpack.c.l.s4 1983009808
    %v228 = vunpack.c.0.s8 %v227
    %v229 = vlaneseq
    %v230 = vshrl.u32 %v229, 7
    %v231 = vsub.s32 %v228, %v230
    %v232 = vrot.slane %v222, %v231
    %v234 = vunpack.c.l.s4 1983009808
    %v235 = vunpack.c.0.s8 %v234
    %v236 = vlaneseq
    %v237 = vshrl.u32 %v236, 7
    %v238 = vsub.s32 %v235, %v237
    %v239 = vrot.slane %v223, %v238
    %v241 = vunpack.c.l.s4 1983009808
    %v242 = vunpack.c.0.s8 %v241
    %v243 = vlaneseq
    %v244 = vshrl.u32 %v243, 7
    %v245 = vsub.s32 %v242, %v244
    %v246 = vrot.slane %v224, %v245
    %v248 = vunpack.c.l.s4 1983009808
    %v249 = vunpack.c.0.s8 %v248
    %v250 = vlaneseq
    %v251 = vshrl.u32 %v250, 7
    %v252 = vsub.s32 %v249, %v251
    %v253 = vrot.slane %v225, %v252
    %v254 = vcombine.low %v232, %v246
    %v255 = vcombine.high %v232, %v246
    %v256 = vcombine.low %v239, %v253
    %v257 = vcombine.high %v239, %v253
    %v266 = vmul.f32 %v170, %v218
    %v267 = vmul.f32 %v171, %v254
    %v268 = vmul.f32 %v172, %v219
    %v269 = vmul.f32 %v173, %v255
    %v270 = vmul.f32 %v174, %v220
    %v271 = vmul.f32 %v175, %v256
    %v272 = vmul.f32 %v176, %v221
    %v273 = vmul.f32 %v177, %v257
    %v274 = vadd.f32 %v25, %v266
    %v275 = vadd.f32 %v26, %v267
    %v276 = vadd.f32 %v27, %v268
    %v277 = vadd.f32 %v28, %v269
    %v278 = vadd.f32 %v29, %v270
    %v279 = vadd.f32 %v30, %v271
    %v280 = vadd.f32 %v31, %v272
    %v281 = vadd.f32 %v32, %v273
    %282 = vst [vmem:[#allocation7] sm:$0xff] %v274
    %283 = vst [vmem:[#allocation7 + $0x8] sm:$0xff] %v275
    %284 = vst [vmem:[#allocation7 + $0x10] sm:$0xff] %v276
    %285 = vst [vmem:[#allocation7 + $0x18] sm:$0xff] %v277
    %286 = vst [vmem:[#allocation7 + $0x20] sm:$0xff] %v278
    %287 = vst [vmem:[#allocation7 + $0x28] sm:$0xff] %v279
    %288 = vst [vmem:[#allocation7 + $0x30] sm:$0xff] %v280
    %289 = vst [vmem:[#allocation7 + $0x38] sm:$0xff] %v281
    // Predicated region
    $region10: #{tpu_custom_call.1} parent=1 // pred_check
      _
    $region11: #{tpu_custom_call.1} parent=1 // pred_check_branch
      %291 = sbr.rel (0) target = $region13
    $region12: #{tpu_custom_call.1} parent=1 // pred_region
      %s293 = ssub.s32 1024, 256
      %294 = vsyncadd [#allocation6], %s293
      %s295 = sshll.u32 [#allocation7], 4
      %s296 = int_to_ptr.vmem [resolvable:$true] %s295
      %301 = dma.vmem_to_hbm [thread:$0]  %s296, 256, %s2, [#allocation6], 256, 256, 16
    $region13: #{tpu_custom_call.1} parent=1 // pred_fallthru
      _
    // Predicated region
    $region14: #{tpu_custom_call.1} parent=1 // pred_check
      _
    $region15: #{tpu_custom_call.1} parent=1 // pred_check_branch
      %303 = sbr.rel (0) target = $region17
    $region16: #{tpu_custom_call.1} parent=1 // pred_region
      %304 = dma.done [#allocation6], 1024
    $region17: #{tpu_custom_call.1} parent=1 // pred_fallthru
      _
    %305 = vsyncpa [#allocation5], 1
    %306 = vsyncpa [#allocation6], 1

</llo_original>
